<compile_context>
chip_gen: v5e
topology: v5e:2x2
jax: 0.10.0
libtpu: 0.0.40
codegen_flags: <defaults>
</compile_context>

<pallas_src>
import functools

import jax
import jax.numpy as jnp
from jax.experimental import pallas as pl
from jax.experimental.pallas import tpu as pltpu


def _round_up(x, m):
    return (x + m - 1) // m * m


def _mlp_softmax_kernel(x_ref, w1_ref, b1_ref, w2_ref, b2_ref, w3_ref, b3_ref, o_ref):
    # Layer 1: Linear + ReLU
    h1 = jnp.dot(x_ref[...], w1_ref[...], preferred_element_type=jnp.float32) + b1_ref[...]
    h1 = jnp.maximum(h1, 0.0)
    # Layer 2: Linear + ReLU
    h2 = jnp.dot(h1, w2_ref[...], preferred_element_type=jnp.float32) + b2_ref[...]
    h2 = jnp.maximum(h2, 0.0)
    # Layer 3: Linear
    logits = jnp.dot(h2, w3_ref[...], preferred_element_type=jnp.float32) + b3_ref[...]
    # Numerically stable softmax over the last axis (exact division: VPU is idle,
    # and exactness guarantees rows sum to 1 within f32 rounding).
    m = jnp.max(logits, axis=-1, keepdims=True)
    e = jnp.exp(logits - m)
    denom = jnp.sum(e, axis=-1, keepdims=True)
    o_ref[...] = (e / denom).astype(o_ref.dtype)


def simple_pattern_model(x, params, *, block_rows=8192):
    """x: [B, C_in] float32.  params: dict of w1,b1,w2,b2,w3,b3 ([in,out] weights, [1,out] biases)."""
    w1, b1, w2, b2, w3, b3 = (params[k] for k in ("w1", "b1", "w2", "b2", "w3", "b3"))
    B, c_in = x.shape
    n = w1.shape[1]
    c_out = w3.shape[1]

    # Batch tile: aim for >= 8 grid steps (pipelining + megacore sharding) while keeping
    # the tile a multiple of 8 sublanes and capped so the lane-padded VMEM footprint
    # stays well inside the explicit vmem_limit_bytes below.
    tb = min(block_rows, max(8, _round_up(pl.cdiv(B, 8), 8)))
    grid = (pl.cdiv(B, tb),)

    def resident_spec(arr):
        # Full-array block, constant index -> fetched once, stays VMEM-resident across grid steps.
        return pl.BlockSpec(arr.shape, lambda i: (0, 0))

    weight_bytes = sum(int(a.size) * a.dtype.itemsize for a in (w1, b1, w2, b2, w3, b3))
    cost = pl.CostEstimate(
        flops=2 * B * (c_in * n + n * n + n * c_out),
        transcendentals=B * c_out,
        bytes_accessed=B * (c_in + c_out) * 4 + weight_bytes,
    )

    out = pl.pallas_call(
        _mlp_softmax_kernel,
        out_shape=jax.ShapeDtypeStruct((B, c_out), jnp.float32),
        grid=grid,
        in_specs=[
            pl.BlockSpec((tb, c_in), lambda i: (i, 0)),   # streamed x tiles
            resident_spec(w1), resident_spec(b1),
            resident_spec(w2), resident_spec(b2),
            resident_spec(w3), resident_spec(b3),
        ],
        out_specs=pl.BlockSpec((tb, c_out), lambda i: (i, 0)),
        compiler_params=pltpu.CompilerParams(
            dimension_semantics=("parallel",),
            vmem_limit_bytes=48 * 1024 * 1024,
        ),
        cost_estimate=cost,
    )(x, w1, b1, w2, b2, w3, b3)

    return out


def init_params(key, in_channels, n=32, out_channels=20):
    """Deterministic parameter init (uniform, roughly matching PyTorch Linear default)."""
    ks = jax.random.split(key, 6)

    def lin(kw, kb, fan_in, fan_out):
        bound = 1.0 / jnp.sqrt(fan_in)
        w = jax.random.uniform(kw, (fan_in, fan_out), jnp.float32, -bound, bound)
        b = jax.random.uniform(kb, (1, fan_out), jnp.float32, -bound, bound)
        return w, b

    w1, b1 = lin(ks[0], ks[1], in_channels, n)
    w2, b2 = lin(ks[2], ks[3], n, n)
    w3, b3 = lin(ks[4], ks[5], n, out_channels)
    return {"w1": w1, "b1": b1, "w2": w2, "b2": b2, "w3": w3, "b3": b3}


def _reference(x, p):
    h1 = jnp.maximum(x @ p["w1"] + p["b1"], 0.0)
    h2 = jnp.maximum(h1 @ p["w2"] + p["b2"], 0.0)
    logits = h2 @ p["w3"] + p["b3"]
    return jax.nn.softmax(logits, axis=-1)


if __name__ == "__main__":
    key = jax.random.PRNGKey(0)
    k_x, k_p = jax.random.split(key)

    batch, in_channels, out_channels = 8, 16, 20
    x = jax.random.normal(k_x, (batch, in_channels), jnp.float32)
    params = init_params(k_p, in_channels, n=32, out_channels=out_channels)

    run = jax.jit(functools.partial(simple_pattern_model, block_rows=8192))
    out = jax.block_until_ready(run(x, params))

    ref = _reference(x, params)
    assert out.shape == (batch, out_channels)
    assert jnp.allclose(out, ref, atol=2e-3, rtol=2e-3), "mismatch vs reference"
    assert jnp.allclose(jnp.sum(out, axis=-1), 1.0, atol=1e-3), "softmax rows must sum to ~1"

    print("KERNEL_OK")
</pallas_src>

<mosaic_0001>
module attributes {stable_mosaic.version = 11 : i64} {
  func.func @_mlp_softmax_kernel(%arg0: i32, %arg1: memref<8x16xf32, #tpu.memory_space<vmem>>, %arg2: memref<16x32xf32, #tpu.memory_space<vmem>>, %arg3: memref<1x32xf32, #tpu.memory_space<vmem>>, %arg4: memref<32x32xf32, #tpu.memory_space<vmem>>, %arg5: memref<1x32xf32, #tpu.memory_space<vmem>>, %arg6: memref<32x20xf32, #tpu.memory_space<vmem>>, %arg7: memref<1x20xf32, #tpu.memory_space<vmem>>, %arg8: memref<8x20xf32, #tpu.memory_space<vmem>>) attributes {dimension_semantics = [#tpu.dimension_semantics<parallel>], iteration_bounds = array<i64: 1>, scalar_prefetch = 0 : i64, scratch_operands = 0 : i64, tpu.core_type = #tpu.core_type<tc>, window_params = [{transform_indices = @transform_0, window_bounds = array<i64: 8, 16>}, {pipeline_mode = #tpu.pipeline_mode<synchronous>, transform_indices = @transform_1, window_bounds = array<i64: 16, 32>}, {pipeline_mode = #tpu.pipeline_mode<synchronous>, transform_indices = @transform_2, window_bounds = array<i64: 1, 32>}, {pipeline_mode = #tpu.pipeline_mode<synchronous>, transform_indices = @transform_3, window_bounds = array<i64: 32, 32>}, {pipeline_mode = #tpu.pipeline_mode<synchronous>, transform_indices = @transform_4, window_bounds = array<i64: 1, 32>}, {pipeline_mode = #tpu.pipeline_mode<synchronous>, transform_indices = @transform_5, window_bounds = array<i64: 32, 20>}, {pipeline_mode = #tpu.pipeline_mode<synchronous>, transform_indices = @transform_6, window_bounds = array<i64: 1, 20>}, {transform_indices = @transform_7, window_bounds = array<i64: 8, 20>}]} {
    %c0 = arith.constant 0 : index
    %c0_0 = arith.constant 0 : index
    %0 = vector.load %arg1[%c0, %c0_0] : memref<8x16xf32, #tpu.memory_space<vmem>>, vector<8x16xf32>
    %c0_1 = arith.constant 0 : index
    %c0_2 = arith.constant 0 : index
    %1 = vector.load %arg2[%c0_1, %c0_2] : memref<16x32xf32, #tpu.memory_space<vmem>>, vector<16x32xf32>
    %cst = arith.constant dense<0.000000e+00> : vector<8x32xf32>
    %2 = tpu.matmul %0, %1, %cst {dimension_numbers = #tpu.dot_dimension_numbers<[1], [0], [0], [1], [0, 0, 1, 1], [], []>} : vector<8x16xf32>, vector<16x32xf32>, vector<8x32xf32> -> vector<8x32xf32>
    %c0_3 = arith.constant 0 : index
    %c0_4 = arith.constant 0 : index
    %3 = vector.load %arg3[%c0_3, %c0_4] : memref<1x32xf32, #tpu.memory_space<vmem>>, vector<1x32xf32>
    %4 = vector.broadcast %3 : vector<1x32xf32> to vector<8x32xf32>
    %5 = arith.addf %2, %4 : vector<8x32xf32>
    %cst_5 = arith.constant 0.000000e+00 : f32
    %6 = vector.broadcast %cst_5 : f32 to vector<8x32xf32>
    %7 = arith.maximumf %5, %6 : vector<8x32xf32>
    %c0_6 = arith.constant 0 : index
    %c0_7 = arith.constant 0 : index
    %8 = vector.load %arg4[%c0_6, %c0_7] : memref<32x32xf32, #tpu.memory_space<vmem>>, vector<32x32xf32>
    %cst_8 = arith.constant dense<0.000000e+00> : vector<8x32xf32>
    %9 = tpu.matmul %7, %8, %cst_8 {dimension_numbers = #tpu.dot_dimension_numbers<[1], [0], [0], [1], [0, 0, 1, 1], [], []>} : vector<8x32xf32>, vector<32x32xf32>, vector<8x32xf32> -> vector<8x32xf32>
    %c0_9 = arith.constant 0 : index
    %c0_10 = arith.constant 0 : index
    %10 = vector.load %arg5[%c0_9, %c0_10] : memref<1x32xf32, #tpu.memory_space<vmem>>, vector<1x32xf32>
    %11 = vector.broadcast %10 : vector<1x32xf32> to vector<8x32xf32>
    %12 = arith.addf %9, %11 : vector<8x32xf32>
    %cst_11 = arith.constant 0.000000e+00 : f32
    %13 = vector.broadcast %cst_11 : f32 to vector<8x32xf32>
    %14 = arith.maximumf %12, %13 : vector<8x32xf32>
    %c0_12 = arith.constant 0 : index
    %c0_13 = arith.constant 0 : index
    %15 = vector.load %arg6[%c0_12, %c0_13] : memref<32x20xf32, #tpu.memory_space<vmem>>, vector<32x20xf32>
    %cst_14 = arith.constant dense<0.000000e+00> : vector<8x20xf32>
    %16 = tpu.matmul %14, %15, %cst_14 {dimension_numbers = #tpu.dot_dimension_numbers<[1], [0], [0], [1], [0, 0, 1, 1], [], []>} : vector<8x32xf32>, vector<32x20xf32>, vector<8x20xf32> -> vector<8x20xf32>
    %c0_15 = arith.constant 0 : index
    %c0_16 = arith.constant 0 : index
    %17 = vector.load %arg7[%c0_15, %c0_16] : memref<1x20xf32, #tpu.memory_space<vmem>>, vector<1x20xf32>
    %18 = vector.broadcast %17 : vector<1x20xf32> to vector<8x20xf32>
    %19 = arith.addf %16, %18 : vector<8x20xf32>
    %cst_17 = arith.constant dense<0xFF800000> : vector<8xf32>
    %20 = vector.multi_reduction <maximumf>, %19, %cst_17 [1] : vector<8x20xf32> to vector<8xf32>
    %21 = vector.shape_cast %20 : vector<8xf32> to vector<8x1xf32>
    %22 = vector.broadcast %21 : vector<8x1xf32> to vector<8x20xf32>
    %23 = arith.subf %19, %22 : vector<8x20xf32>
    %24 = math.exp %23 : vector<8x20xf32>
    %cst_18 = arith.constant dense<0.000000e+00> : vector<8xf32>
    %25 = vector.multi_reduction <add>, %24, %cst_18 [1] : vector<8x20xf32> to vector<8xf32>
    %26 = vector.shape_cast %25 : vector<8xf32> to vector<8x1xf32>
    %27 = vector.broadcast %26 : vector<8x1xf32> to vector<8x20xf32>
    %28 = arith.divf %24, %27 : vector<8x20xf32>
    %c0_19 = arith.constant 0 : index
    %c0_20 = arith.constant 0 : index
    %29 = vector.load %arg8[%c0_19, %c0_20] : memref<8x20xf32, #tpu.memory_space<vmem>>, vector<8x20xf32>
    tpu.vector_store %arg8[%c0_19, %c0_20], %28 {strides = array<i32>} : memref<8x20xf32, #tpu.memory_space<vmem>>, vector<8x20xf32>,
    return
  }
  func.func @transform_0(%arg0: i32) -> (i32, i32) {
    %c0_i32 = arith.constant 0 : i32
    %c0_i32_0 = arith.constant 0 : i32
    return %arg0, %c0_i32 : i32, i32
  }
  func.func @transform_1(%arg0: i32) -> (i32, i32) {
    %c0_i32 = arith.constant 0 : i32
    %c0_i32_0 = arith.constant 0 : i32
    %c0_i32_1 = arith.constant 0 : i32
    return %c0_i32, %c0_i32_0 : i32, i32
  }
  func.func @transform_2(%arg0: i32) -> (i32, i32) {
    %c0_i32 = arith.constant 0 : i32
    %c0_i32_0 = arith.constant 0 : i32
    %c0_i32_1 = arith.constant 0 : i32
    return %c0_i32, %c0_i32_0 : i32, i32
  }
  func.func @transform_3(%arg0: i32) -> (i32, i32) {
    %c0_i32 = arith.constant 0 : i32
    %c0_i32_0 = arith.constant 0 : i32
    %c0_i32_1 = arith.constant 0 : i32
    return %c0_i32, %c0_i32_0 : i32, i32
  }
  func.func @transform_4(%arg0: i32) -> (i32, i32) {
    %c0_i32 = arith.constant 0 : i32
    %c0_i32_0 = arith.constant 0 : i32
    %c0_i32_1 = arith.constant 0 : i32
    return %c0_i32, %c0_i32_0 : i32, i32
  }
  func.func @transform_5(%arg0: i32) -> (i32, i32) {
    %c0_i32 = arith.constant 0 : i32
    %c0_i32_0 = arith.constant 0 : i32
    %c0_i32_1 = arith.constant 0 : i32
    return %c0_i32, %c0_i32_0 : i32, i32
  }
  func.func @transform_6(%arg0: i32) -> (i32, i32) {
    %c0_i32 = arith.constant 0 : i32
    %c0_i32_0 = arith.constant 0 : i32
    %c0_i32_1 = arith.constant 0 : i32
    return %c0_i32, %c0_i32_0 : i32, i32
  }
  func.func @transform_7(%arg0: i32) -> (i32, i32) {
    %c0_i32 = arith.constant 0 : i32
    %c0_i32_0 = arith.constant 0 : i32
    return %arg0, %c0_i32 : i32, i32
  }
}

</mosaic_0001>

<llo_original>
// kernel: simple_pattern_model.1
$region0: #{simple_pattern_model.1}
  #allocation0 [shape = 'u32[]', space=smem, size = 0x4, offset = 0x4, fixed_abs, tag = 'smem constant byte address 0x4 - core index']
  #allocation1 [shape = 'u32[72,128]{1,0:T(1,128)}', space=vmem, size = 0x9000, scoped, tag = 'internal scratch']
  %s0 = inlined_call_operand.vmem [shape: f32[8,16], index: 0, kind: input, shape index: {}]
  %s1 = inlined_call_operand.vmem [shape: f32[16,32], index: 1, kind: input, shape index: {}]
  %s2 = inlined_call_operand.vmem [shape: f32[1,32], index: 2, kind: input, shape index: {}]
  %s3 = inlined_call_operand.vmem [shape: f32[32,32], index: 3, kind: input, shape index: {}]
  %s4 = inlined_call_operand.vmem [shape: f32[1,32], index: 4, kind: input, shape index: {}]
  %s5 = inlined_call_operand.vmem [shape: f32[32,20], index: 5, kind: input, shape index: {}]
  %s6 = inlined_call_operand.vmem [shape: f32[1,20], index: 6, kind: input, shape index: {}]
  %s7 = inlined_call_operand.hbm [shape: f32[8,20], index: 7, kind: output, shape index: {}]
  %s8 = sld [smem:[#allocation0]]
  $region38: #{simple_pattern_model.1} parent=0
    _
  %s10 = ssub.s32 1, %s8
  %s11 = scalar_select 0, %s10, %s8
  $region1: #{simple_pattern_model.1} parent=0
    #allocation2 [shape = 'u8[4096]{0}', space=vmem, size = 0x1000, scoped, tag = 'output window, operand 0, single buffered']
    #allocation3 [shape = 's32[1]{0}', space=sflag, size = 0x4, scoped, tag = 'scoped memory for simple_pattern_model.1']
    %12 = vsyncpa [#allocation3], 0
    // Predicated region
    $region2: #{simple_pattern_model.1} parent=1 // pred_check
      _
    $region3: #{simple_pattern_model.1} parent=1 // pred_check_branch
      %14 = sbr.rel (0) target = $region5
    $region4: #{simple_pattern_model.1} parent=1 // pred_region
      _
    $region5: #{simple_pattern_model.1} parent=1 // pred_fallthru
      _
    // Predicated region
    $region6: #{simple_pattern_model.1} parent=1 // pred_check
      _
    $region7: #{simple_pattern_model.1} parent=1 // pred_check_branch
      %16 = sbr.rel (0) target = $region9
    $region8: #{simple_pattern_model.1} parent=1 // pred_region
      _
    $region9: #{simple_pattern_model.1} parent=1 // pred_fallthru
      _
    // Predicated region
    $region10: #{simple_pattern_model.1} parent=1 // pred_check
      _
    $region11: #{simple_pattern_model.1} parent=1 // pred_check_branch
      %18 = sbr.rel (0) target = $region13
    $region12: #{simple_pattern_model.1} parent=1 // pred_region
      _
    $region13: #{simple_pattern_model.1} parent=1 // pred_fallthru
      _
    // Predicated region
    $region14: #{simple_pattern_model.1} parent=1 // pred_check
      _
    $region15: #{simple_pattern_model.1} parent=1 // pred_check_branch
      %20 = sbr.rel (0) target = $region17
    $region16: #{simple_pattern_model.1} parent=1 // pred_region
      _
    $region17: #{simple_pattern_model.1} parent=1 // pred_fallthru
      _
    // Predicated region
    $region18: #{simple_pattern_model.1} parent=1 // pred_check
      _
    $region19: #{simple_pattern_model.1} parent=1 // pred_check_branch
      %22 = sbr.rel (0) target = $region21
    $region20: #{simple_pattern_model.1} parent=1 // pred_region
      _
    $region21: #{simple_pattern_model.1} parent=1 // pred_fallthru
      _
    // Predicated region
    $region22: #{simple_pattern_model.1} parent=1 // pred_check
      _
    $region23: #{simple_pattern_model.1} parent=1 // pred_check_branch
      %24 = sbr.rel (0) target = $region25
    $region24: #{simple_pattern_model.1} parent=1 // pred_region
      _
    $region25: #{simple_pattern_model.1} parent=1 // pred_fallthru
      _
    // Predicated region
    $region26: #{simple_pattern_model.1} parent=1 // pred_check
      _
    $region27: #{simple_pattern_model.1} parent=1 // pred_check_branch
      %26 = sbr.rel (0) target = $region29
    $region28: #{simple_pattern_model.1} parent=1 // pred_region
      _
    $region29: #{simple_pattern_model.1} parent=1 // pred_fallthru
      _
    %v27 = vld [vmem:[%s0] sm:$0xff]
    %v28 = vld [vmem:[%s1] sm:$0xff]
    %v29 = vld [vmem:[%s1 + $0x8] sm:$0xff]
    %v30 = vld [vmem:[%s2] sm:$0x1]
    %v32 = vperm.slane %v30, 0
    %vm34 = vcmask 130048
    %v36 = vsel %vm34, %v27, 0
    %38 = vmatpush.msra.mxu0 0.0
    %39 = vmatpush.msra.mxu0 0.0
    %40 = vmatpush.msra.mxu0 0.0
    %41 = vmatpush.msra.mxu0 0.0
    %42 = vmatpush.msra.mxu0 0.0
    %43 = vmatpush.msra.mxu0 0.0
    %44 = vmatpush.msra.mxu0 0.0
    %45 = vmatpush.msra.mxu0 0.0
    %46 = vmatpush.msra.mxu0 0.0
    %47 = vmatpush.msra.mxu0 0.0
    %48 = vmatpush.msra.mxu0 0.0
    %49 = vmatpush.msra.mxu0 0.0
    %50 = vmatpush.msra.mxu0 0.0
    %51 = vmatpush.msra.mxu0 0.0
    %52 = vmatpush.msra.mxu0 %v29
    %53 = vmatpush.msra.mxu0 %v28
    %54 = vmatmul.f32.gmra.mxu0 %v36
    %v55 = vpop.f32.mrf.mxu0
    %v56 = vadd.f32 %v32, %v55
    %57 = vdwg.mxu0
    %v58 = vmax.f32 %v56, 0.0
    %v59 = vld [vmem:[%s3] sm:$0xff]
    %v60 = vld [vmem:[%s3 + $0x8] sm:$0xff]
    %v61 = vld [vmem:[%s3 + $0x10] sm:$0xff]
    %v62 = vld [vmem:[%s3 + $0x18] sm:$0xff]
    %v63 = vld [vmem:[%s4] sm:$0x1]
    %v65 = vperm.slane %v63, 0
    %vm67 = vcmask 261120
    %v69 = vsel %vm67, %v58, 0
    %71 = vmatpush.msra.mxu0 0.0
    %72 = vmatpush.msra.mxu0 0.0
    %73 = vmatpush.msra.mxu0 0.0
    %74 = vmatpush.msra.mxu0 0.0
    %75 = vmatpush.msra.mxu0 0.0
    %76 = vmatpush.msra.mxu0 0.0
    %77 = vmatpush.msra.mxu0 0.0
    %78 = vmatpush.msra.mxu0 0.0
    %79 = vmatpush.msra.mxu0 0.0
    %80 = vmatpush.msra.mxu0 0.0
    %81 = vmatpush.msra.mxu0 0.0
    %82 = vmatpush.msra.mxu0 0.0
    %83 = vmatpush.msra.mxu0 %v62
    %84 = vmatpush.msra.mxu0 %v61
    %85 = vmatpush.msra.mxu0 %v60
    %86 = vmatpush.msra.mxu0 %v59
    %87 = vmatmul.f32.gmra.mxu0 %v69
    %v88 = vpop.f32.mrf.mxu0
    %v89 = vadd.f32 %v65, %v88
    %90 = vdwg.mxu0
    %v91 = vmax.f32 %v89, 0.0
    %v92 = vld [vmem:[%s5] sm:$0xff]
    %v93 = vld [vmem:[%s5 + $0x8] sm:$0xff]
    %v94 = vld [vmem:[%s5 + $0x10] sm:$0xff]
    %v95 = vld [vmem:[%s5 + $0x18] sm:$0xff]
    %v96 = vld [vmem:[%s6] sm:$0x1]
    %v98 = vperm.slane %v96, 0
    %v101 = vsel %vm67, %v91, 0
    %103 = vmatpush.msra.mxu0 0.0
    %104 = vmatpush.msra.mxu0 0.0
    %105 = vmatpush.msra.mxu0 0.0
    %106 = vmatpush.msra.mxu0 0.0
    %107 = vmatpush.msra.mxu0 0.0
    %108 = vmatpush.msra.mxu0 0.0
    %109 = vmatpush.msra.mxu0 0.0
    %110 = vmatpush.msra.mxu0 0.0
    %111 = vmatpush.msra.mxu0 0.0
    %112 = vmatpush.msra.mxu0 0.0
    %113 = vmatpush.msra.mxu0 0.0
    %114 = vmatpush.msra.mxu0 0.0
    %115 = vmatpush.msra.mxu0 %v95
    %116 = vmatpush.msra.mxu0 %v94
    %117 = vmatpush.msra.mxu0 %v93
    %118 = vmatpush.msra.mxu0 %v92
    %119 = vmatmul.f32.gmra.mxu0 %v101
    %v120 = vpop.f32.mrf.mxu0
    %v121 = vadd.f32 %v98, %v120
    %122 = vdwg.mxu0
    %vm123 = vcmask 162816
    %v124 = vsel %vm123, %v121, -inf
    %125 = vmax.xlane.f32.xlu0 %v124
    %v126 = vpop.xlane.xlu0 %125
    %v127 = vsub.f32 %v121, %v126
    %v128 = vmul.f32 %v127, 1.442695
    %v129 = vpow.pop %v128
    %v130 = vsel %vm123, %v129, 0.0
    %131 = vadd.xlane.f32.xlu0 %v130
    %v132 = vpop.xlane.xlu0 %131
    %v133 = vrcp.pop %v132
    %v134 = vmul.f32 %v132, %v133
    %v135 = vsub.f32 1.0, %v134
    %v136 = vmul.f32 %v133, %v135
    %v137 = vadd.f32 %v133, %v136
    %vm138 = vweird.f32 %v132
    %vm139 = vweird.f32 %v133
    %vm140 = vmor %vm138, %vm139
    %v141 = vsel %vm140, %v133, %v137
    %v142 = vand.u32 2147483647, %v132
    %vm143 = vcmp.eq.f32.partialorder %v142, 8.507059e+37
    %v144 = vand.u32 %v132, 2147483648
    %v145 = vor.u32 1.1754944e-38, %v144
    %v146 = vsel %vm143, %v145, %v141
    %v147 = vmul.f32 %v129, %v146
    %148 = vst.msk [vmem:[#allocation2] sm:$0xff] %vm123, %v147
    // Predicated region
    $region30: #{simple_pattern_model.1} parent=1 // pred_check
      _
    $region31: #{simple_pattern_model.1} parent=1 // pred_check_branch
      %150 = sbr.rel (0) target = $region33
    $region32: #{simple_pattern_model.1} parent=1 // pred_region
      %152 = vsyncadd [#allocation3], 0
      %s154 = sshll.u32 [#allocation2], 4
      %s155 = int_to_ptr.vmem [resolvable:$true] %s154
      %s156 = sshll.u32 %s7, 4
      %s157 = int_to_ptr.hbm [resolvable:$true] %s156
      %159 = dma.vmem_to_hbm [thread:$0]  %s155, 128, %s157, [#allocation3]
    $region33: #{simple_pattern_model.1} parent=1 // pred_fallthru
      _
    // Predicated region
    $region34: #{simple_pattern_model.1} parent=1 // pred_check
      _
    $region35: #{simple_pattern_model.1} parent=1 // pred_check_branch
      %161 = sbr.rel (0) target = $region37
    $region36: #{simple_pattern_model.1} parent=1 // pred_region
      %163 = dma.done [#allocation3], 128
    $region37: #{simple_pattern_model.1} parent=1 // pred_fallthru
      _
    %164 = vsyncpa [#allocation3], 1

</llo_original>
